<compile_context>
chip_gen: v7x
topology: tpu7x:2x2x1
jax: 0.10.0
libtpu: 0.0.40
codegen_flags: <defaults>
</compile_context>

<pallas_src>
import jax
import jax.numpy as jnp
from jax.experimental import pallas as pl
from jax.experimental.pallas import tpu as pltpu


def _mul_const_kernel(c_ref, x_ref, o_ref):
    # c_ref: (1, 1) f32 scalar in SMEM; x_ref / o_ref: (block_rows, lane) VMEM tiles.
    c = c_ref[0, 0]
    x = x_ref[...]
    if jnp.issubdtype(o_ref.dtype, jnp.floating):
        # f32 op-math, then cast: matches PyTorch's scalar handling for bf16/half.
        o_ref[...] = (x.astype(jnp.float32) * c).astype(o_ref.dtype)
    else:
        # Integer output (int tensor * int constant): multiply in the int dtype.
        o_ref[...] = x * c.astype(o_ref.dtype)


def _tpu_generation_params():
    """Return (target_block_bytes, vmem_limit_bytes, num_tensorcores) for this TPU."""
    try:
        kind = jax.devices()[0].device_kind.lower()
    except Exception:  # no TPU info available -> conservative defaults
        kind = ""
    if "v7" in kind or "tpu7" in kind:
        # ~8 MiB blocks; double-buffered in+out ~= 32 MiB, so raise the scoped limit.
        return 8 << 20, 40 << 20, 2
    if "v6" in kind or "tpu6" in kind:
        return 4 << 20, None, 1      # 16 MiB pipelined footprint < 32 MiB default
    return 2 << 20, None, 1          # v5e (and unknown chips): 8 MiB footprint < 16 MiB


def multiply_by_constant(x, constant, *, small_input_bytes=512 << 10, donate_x=False):
    """Elementwise x * constant. Pallas TPU kernel for large lane-aligned arrays."""
    x = jnp.asarray(x)
    orig_shape = x.shape
    in_dtype = x.dtype
    n = x.size

    # Output dtype mirrors PyTorch scalar promotion: float tensors keep their dtype,
    # integer/bool tensors multiplied by a python float promote to float32.
    if jnp.issubdtype(in_dtype, jnp.floating):
        out_dtype = in_dtype
    elif isinstance(constant, float):
        out_dtype = jnp.float32
    else:
        out_dtype = in_dtype

    def _plain(xv):
        if jnp.issubdtype(jnp.dtype(out_dtype), jnp.floating):
            return (xv.astype(jnp.float32) * jnp.float32(constant)).astype(out_dtype)
        return xv * jnp.asarray(constant, out_dtype)

    if n == 0:
        return jnp.zeros(orig_shape, out_dtype)

    itemsize = jnp.dtype(in_dtype).itemsize
    total_bytes = n * itemsize

    # --- small-input fast path: kernel launch would be pure overhead ---
    if total_bytes < small_input_bytes:
        return _plain(x).reshape(orig_shape)

    # --- lane-dense 2-D view: widest lane width (multiple of 128) dividing n ---
    lane = next((w for w in (1024, 512, 256, 128) if n % w == 0), None)
    if lane is None:
        # Awkward element count (n % 128 != 0). A pad + [:n] round-trip would add
        # 2-3x HBM traffic to a purely bandwidth-bound op, so hand this rare case
        # to XLA's (already roofline) elementwise codegen instead.
        # TODO(synk): keep this in-kernel with a 1-D masked-tail BlockSpec.
        return _plain(x).reshape(orig_shape)

    rows = n // lane
    x2d = x.reshape(rows, lane)  # row-major flatten: no data movement

    target_block_bytes, vmem_limit_bytes, n_tc = _tpu_generation_params()

    # ~target_block_bytes per block, 32-row aligned (f32/bf16/int8 sublane packing).
    block_rows = max(32, (target_block_bytes // (lane * itemsize)) // 32 * 32)

    # Keep the grid at >= 2*num_TC steps for mid/large arrays so v7x shards work
    # across both TensorCores and the DMA pipeline stays busy on every chip.
    min_steps = 2 * n_tc if n_tc > 1 else 2
    if total_bytes >= min_steps * (512 << 10):
        cap = ((pl.cdiv(rows, min_steps) + 31) // 32) * 32
        block_rows = min(block_rows, max(32, cap))
    block_rows = min(block_rows, rows)

    grid = (pl.cdiv(rows, block_rows),)  # partial last block is masked by Pallas

    # Constant travels as a 32-bit scalar in SMEM; cast happens in-kernel.
    c = jnp.asarray(constant, dtype=jnp.float32).reshape(1, 1)

    # Optional in-place variant: reuse x's HBM buffer for the output when donated.
    aliases = {}
    if donate_x and jnp.dtype(out_dtype) == jnp.dtype(in_dtype):
        aliases = {1: 0}

    out2d = pl.pallas_call(
        _mul_const_kernel,
        out_shape=jax.ShapeDtypeStruct((rows, lane), out_dtype),
        grid_spec=pl.GridSpec(
            grid=grid,
            in_specs=[
                pl.BlockSpec(memory_space=pltpu.SMEM),               # constant scalar
                pl.BlockSpec((block_rows, lane), lambda i: (i, 0)),  # x tile
            ],
            out_specs=pl.BlockSpec((block_rows, lane), lambda i: (i, 0)),
        ),
        compiler_params=pltpu.CompilerParams(
            dimension_semantics=("parallel",),
            vmem_limit_bytes=vmem_limit_bytes,
        ),
        input_output_aliases=aliases,
    )(c, x2d)

    return out2d.reshape(orig_shape)


if __name__ == "__main__":
    constant = 2.5
    keys = jax.random.split(jax.random.PRNGKey(0), 6)

    # 1) Primary case matching the module's typical NCHW input; force the Pallas
    #    path so the kernel itself is exercised at this shape.
    x = jax.random.normal(keys[0], (2, 4, 16, 16), dtype=jnp.float32)
    y = jax.block_until_ready(multiply_by_constant(x, constant, small_input_bytes=0))
    assert y.shape == x.shape and y.dtype == x.dtype
    assert jnp.allclose(y, x * constant, rtol=1e-6, atol=1e-6), "mismatch (primary)"

    # 2) Multi-block grid with a partial (masked) final block.
    x2 = jax.random.normal(keys[1], (600, 1024), dtype=jnp.float32)
    y2 = jax.block_until_ready(multiply_by_constant(x2, constant))
    assert jnp.allclose(y2, x2 * constant, rtol=1e-6, atol=1e-6), "mismatch (partial block)"

    # 3) bf16 input: f32 op-math inside the kernel, cast back to bf16.
    x3 = jax.random.normal(keys[2], (8, 512, 256), dtype=jnp.bfloat16)
    y3 = jax.block_until_ready(multiply_by_constant(x3, constant))
    ref3 = (x3.astype(jnp.float32) * constant).astype(jnp.bfloat16)
    assert y3.dtype == jnp.bfloat16
    assert jnp.allclose(y3.astype(jnp.float32), ref3.astype(jnp.float32),
                        rtol=2e-2, atol=2e-2), "mismatch (bf16)"

    # 4) Donated input: in-place aliasing via input_output_aliases under jit.
    x4 = jax.random.normal(keys[3], (512, 1024), dtype=jnp.float32)
    ref4 = x4 * constant
    mul_donated = jax.jit(lambda v: multiply_by_constant(v, constant, donate_x=True),
                          donate_argnums=0)
    y4 = jax.block_until_ready(mul_donated(x4))
    assert jnp.allclose(y4, ref4, rtol=1e-6, atol=1e-6), "mismatch (donated)"

    # 5) Awkward element count (n % 128 != 0): no pad/slice copies, XLA fallback.
    x5 = jax.random.normal(keys[4], (3, 5, 7), dtype=jnp.float32)
    y5 = jax.block_until_ready(multiply_by_constant(x5, constant))
    assert jnp.allclose(y5, x5 * constant, rtol=1e-6, atol=1e-6), "mismatch (awkward)"

    # 6) Integer input * python float promotes to float32 (PyTorch semantics).
    x6 = jax.random.randint(keys[5], (64, 128), -100, 100, dtype=jnp.int32)
    y6 = jax.block_until_ready(multiply_by_constant(x6, constant))
    assert y6.dtype == jnp.float32
    assert jnp.allclose(y6, x6.astype(jnp.float32) * constant), "mismatch (int promo)"

    print("KERNEL_OK")
</pallas_src>

<mosaic_0001>
module attributes {stable_mosaic.version = 11 : i64} {
  func.func @_mul_const_kernel(%arg0: i32, %arg1: memref<1x1xf32, #tpu.memory_space<smem>>, %arg2: memref<2x1024xf32, #tpu.memory_space<vmem>>, %arg3: memref<2x1024xf32, #tpu.memory_space<vmem>>) attributes {dimension_semantics = [#tpu.dimension_semantics<parallel>], iteration_bounds = array<i64: 1>, scalar_prefetch = 0 : i64, scratch_operands = 0 : i64, tpu.core_type = #tpu.core_type<tc>, window_params = [{transform_indices = @transform_0, window_bounds = array<i64: 1, 1>}, {transform_indices = @transform_1, window_bounds = array<i64: 2, 1024>}, {transform_indices = @transform_2, window_bounds = array<i64: 2, 1024>}]} {
    %c0 = arith.constant 0 : index
    %c0_0 = arith.constant 0 : index
    %0 = memref.load %arg1[%c0, %c0_0] : memref<1x1xf32, #tpu.memory_space<smem>>
    %c0_1 = arith.constant 0 : index
    %c0_2 = arith.constant 0 : index
    %1 = vector.load %arg2[%c0_1, %c0_2] : memref<2x1024xf32, #tpu.memory_space<vmem>>, vector<2x1024xf32>
    %2 = vector.broadcast %0 : f32 to vector<2x1024xf32>
    %3 = arith.mulf %1, %2 : vector<2x1024xf32>
    %c0_3 = arith.constant 0 : index
    %c0_4 = arith.constant 0 : index
    %4 = vector.load %arg3[%c0_3, %c0_4] : memref<2x1024xf32, #tpu.memory_space<vmem>>, vector<2x1024xf32>
    tpu.vector_store %arg3[%c0_3, %c0_4], %3 {strides = array<i32>} : memref<2x1024xf32, #tpu.memory_space<vmem>>, vector<2x1024xf32>,
    return
  }
  func.func @transform_0(%arg0: i32) -> (i32, i32) {
    %c0_i32 = arith.constant 0 : i32
    %c0_i32_0 = arith.constant 0 : i32
    %c0_i32_1 = arith.constant 0 : i32
    return %c0_i32, %c0_i32_0 : i32, i32
  }
  func.func @transform_1(%arg0: i32) -> (i32, i32) {
    %c0_i32 = arith.constant 0 : i32
    %c0_i32_0 = arith.constant 0 : i32
    return %arg0, %c0_i32 : i32, i32
  }
  func.func @transform_2(%arg0: i32) -> (i32, i32) {
    %c0_i32 = arith.constant 0 : i32
    %c0_i32_0 = arith.constant 0 : i32
    return %arg0, %c0_i32 : i32, i32
  }
}

</mosaic_0001>

<llo_original>
// kernel: tpu_custom_call.1
$region0: #{tpu_custom_call.1}
  #allocation0 [shape = 'u32[]', space=smem, size = 0x4, offset = 0x4, fixed_abs, tag = 'smem constant byte address 0x4 - core index']
  #allocation1 [shape = 'u32[144,128]{1,0:T(1,128)}', space=vmem, size = 0x12000, scoped, tag = 'internal scratch']
  #allocation2 [shape = 'f32[1,1]{1,0:T(1,128)S(6)}', space=smem, size = 0x200, scoped, tag = 'scoped memory for tpu_custom_call.1']
  %s0 = inlined_call_operand.<no memory space> [shape: f32[1,1], index: 0, kind: input, shape index: {}]
  %s1 = inlined_call_operand.hbm [shape: f32[2,1024], index: 1, kind: input, shape index: {}]
  %s2 = inlined_call_operand.hbm [shape: f32[2,1024], index: 2, kind: output, shape index: {}]
  %s3 = sld [smem:[#allocation0]]
  $region22: #{tpu_custom_call.1} parent=0
    _
  %s5 = ssub.s32 1, %s3
  %s6 = scalar_select 0, %s5, %s3
  %7 = sst [smem:[#allocation2]] %s0
  $region1: #{tpu_custom_call.1} parent=0
    #allocation3 [shape = 'u8[8192]{0}', space=vmem, size = 0x2000, scoped, tag = 'input window, operand 1, single buffered']
    #allocation4 [shape = 's32[1]{0}', space=sflag, size = 0x4, scoped, tag = 'scoped memory for tpu_custom_call.1']
    #allocation5 [shape = 's32[1]{0}', space=sflag, size = 0x4, scoped, tag = 'scoped memory for tpu_custom_call.1']
    #allocation6 [shape = 'u8[8192]{0}', space=vmem, size = 0x2000, scoped, tag = 'output window, operand 0, single buffered']
    %8 = vsyncpa [#allocation4], 0
    %9 = vsyncpa [#allocation5], 0
    // Predicated region
    $region2: #{tpu_custom_call.1} parent=1 // pred_check
      _
    $region3: #{tpu_custom_call.1} parent=1 // pred_check_branch
      %11 = sbr.rel (0) target = $region5
    $region4: #{tpu_custom_call.1} parent=1 // pred_region
      _
    $region5: #{tpu_custom_call.1} parent=1 // pred_fallthru
      _
    // Predicated region
    $region6: #{tpu_custom_call.1} parent=1 // pred_check
      _
    $region7: #{tpu_custom_call.1} parent=1 // pred_check_branch
      %13 = sbr.rel (0) target = $region9
    $region8: #{tpu_custom_call.1} parent=1 // pred_region
      %s15 = ssub.s32 256, 256
      %16 = vsyncadd [#allocation4], %s15
      %s18 = sshll.u32 [#allocation3], 4
      %s19 = int_to_ptr.vmem [resolvable:$true] %s18
      %21 = dma.hbm_to_vmem [thread:$0]  %s1, 256, %s19, [#allocation4]
    $region9: #{tpu_custom_call.1} parent=1 // pred_fallthru
      _
    // Predicated region
    $region10: #{tpu_custom_call.1} parent=1 // pred_check
      _
    $region11: #{tpu_custom_call.1} parent=1 // pred_check_branch
      %23 = sbr.rel (0) target = $region13
    $region12: #{tpu_custom_call.1} parent=1 // pred_region
      %24 = dma.done [#allocation4], 256
    $region13: #{tpu_custom_call.1} parent=1 // pred_fallthru
      _
    %s25 = sld [smem:[#allocation2]]
    %v26 = vld [vmem:[#allocation3] sm:$0xff]
    %v27 = vld [vmem:[#allocation3 + $0x8] sm:$0xff]
    %v28 = vstv %s25
    %v29 = vmul.f32 %v26, %v28
    %v30 = vmul.f32 %v27, %v28
    %31 = vst [vmem:[#allocation6] sm:$0xff] %v29
    %32 = vst [vmem:[#allocation6 + $0x8] sm:$0xff] %v30
    // Predicated region
    $region14: #{tpu_custom_call.1} parent=1 // pred_check
      _
    $region15: #{tpu_custom_call.1} parent=1 // pred_check_branch
      %34 = sbr.rel (0) target = $region17
    $region16: #{tpu_custom_call.1} parent=1 // pred_region
      %s36 = ssub.s32 256, 256
      %37 = vsyncadd [#allocation5], %s36
      %s39 = sshll.u32 [#allocation6], 4
      %s40 = int_to_ptr.vmem [resolvable:$true] %s39
      %42 = dma.vmem_to_hbm [thread:$0]  %s40, 256, %s2, [#allocation5]
    $region17: #{tpu_custom_call.1} parent=1 // pred_fallthru
      _
    // Predicated region
    $region18: #{tpu_custom_call.1} parent=1 // pred_check
      _
    $region19: #{tpu_custom_call.1} parent=1 // pred_check_branch
      %44 = sbr.rel (0) target = $region21
    $region20: #{tpu_custom_call.1} parent=1 // pred_region
      %45 = dma.done [#allocation5], 256
    $region21: #{tpu_custom_call.1} parent=1 // pred_fallthru
      _
    %46 = vsyncpa [#allocation4], 1
    %47 = vsyncpa [#allocation5], 1

</llo_original>
